<compile_context>
chip_gen: v7x
topology: tpu7x:2x2x1
jax: 0.10.0
libtpu: 0.0.40
codegen_flags: <defaults>
</compile_context>

<pallas_src>
import jax
import jax.numpy as jnp
from jax import lax
from jax.experimental import pallas as pl
from jax.experimental.pallas import tpu as pltpu


# ----------------------------------------------------------------------------
# Fused kernel: EngineeringVisionEncoder (parallel adapter mode) + prefix proj
# ----------------------------------------------------------------------------
def _image_block_kernel(x_ref, w1_ref, b1_ref, wbig_ref, btot_ref,
                        pfx_ref, wpp_ref, bpp_ref, out_ref, lhs_ref):
    """Grid = (batch tiles i, E tiles e).

    At e == 0 (once per batch tile) build the fused LHS into VMEM scratch:
        lhs = [x | relu(x @ W1cat + b1cat)]                      # [bm, 4V]
    Every (i, e) then does one lane-dense matmul per tile:
        encoded_tile = (lhs @ Wbig[:, e] + btot[:, e]) / 4
        prefix_tile  = prefix @ Wproj[:, e] + bproj[:, e]
    Output is slot-major [2, bm, be]: slot 0 = projected image prefix
    (broadcast over batch), slot 1 = encoded image features.
    """
    e = pl.program_id(1)
    V = x_ref.shape[1]

    @pl.when(e == 0)
    def _():
        x = x_ref[...]
        h = jnp.dot(x, w1_ref[...], preferred_element_type=jnp.float32)
        h = jnp.maximum(h + b1_ref[...], 0.0)        # ReLU; dropout = identity (eval)
        lhs_ref[:, :V] = x.astype(jnp.float32)
        lhs_ref[:, V:] = h

    lhs = lhs_ref[...].astype(wbig_ref.dtype)
    enc = jnp.dot(lhs, wbig_ref[...], preferred_element_type=jnp.float32)
    enc = (enc + btot_ref[...]) * 0.25               # parallel adapter mode: /4.0

    pfx = jnp.dot(pfx_ref[...], wpp_ref[...], preferred_element_type=jnp.float32)
    pfx = pfx + bpp_ref[...]                         # [1, be]

    bm = out_ref.shape[1]
    out_ref[0] = jnp.broadcast_to(pfx, (bm, pfx.shape[-1])).astype(out_ref.dtype)
    out_ref[1] = enc.astype(out_ref.dtype)


def encode_image_block(x, w1cat, b1cat, wbig, btot, prefix, wproj, bproj,
                       *, bm=None, be=None):
    """x: [B, V] -> [2, B, E] (slot 0 = projected prefix, slot 1 = encoded)."""
    B, V = x.shape
    H3 = w1cat.shape[1]            # 3 * V
    K4 = wbig.shape[0]             # 4 * V
    E = wbig.shape[1]

    if bm is None:
        bm = min(B, 256)
    if be is None:
        # Bound resident weight tiles (v7x has 64 MiB VMEM / no fp32 MXU); at
        # production dims the pipeline hides the per-tile weight DMA.
        be = E if E <= 512 else 512
    nb = pl.cdiv(B, bm)
    ne = pl.cdiv(E, be)

    itemsize = jnp.dtype(x.dtype).itemsize
    flops = 2 * B * V * H3 + 2 * B * K4 * E + 2 * E * E * ne + 4 * B * E
    bytes_accessed = itemsize * (B * V + V * H3 + H3 + K4 * E + E
                                 + E + E * E + E + 2 * B * E)

    grid_spec = pltpu.PrefetchScalarGridSpec(
        num_scalar_prefetch=0,
        grid=(nb, ne),
        in_specs=[
            pl.BlockSpec((bm, V), lambda i, e: (i, 0)),    # x
            pl.BlockSpec((V, H3), lambda i, e: (0, 0)),    # W1cat  [V, 3V]
            pl.BlockSpec((1, H3), lambda i, e: (0, 0)),    # b1cat  [1, 3V]
            pl.BlockSpec((K4, be), lambda i, e: (0, e)),   # Wbig   [4V, E] (E-tiled)
            pl.BlockSpec((1, be), lambda i, e: (0, e)),    # btot   [1, E]
            pl.BlockSpec((1, E), lambda i, e: (0, 0)),     # image prefix [1, E]
            pl.BlockSpec((E, be), lambda i, e: (0, e)),    # prefix proj W [E, E]
            pl.BlockSpec((1, be), lambda i, e: (0, e)),    # prefix proj b [1, E]
        ],
        out_specs=pl.BlockSpec((2, bm, be), lambda i, e: (0, i, e)),
        scratch_shapes=[pltpu.VMEM((bm, K4), jnp.float32)],
    )

    return pl.pallas_call(
        _image_block_kernel,
        out_shape=jax.ShapeDtypeStruct((2, B, E), x.dtype),
        grid_spec=grid_spec,
        compiler_params=pltpu.CompilerParams(
            dimension_semantics=("parallel", "arbitrary")),
        cost_estimate=pl.CostEstimate(flops=flops, transcendentals=0,
                                      bytes_accessed=bytes_accessed),
    )(x, w1cat, b1cat, wbig, btot, prefix, wproj, bproj)


# ----------------------------------------------------------------------------
# EngineeringVLAdapter.forward (adapter portion)
# ----------------------------------------------------------------------------
@jax.jit
def engineering_vl_adapter_forward(params, input_ids, attention_mask,
                                   image_features):
    """Returns (combined_embeds [B, S+2, E], extended_attention_mask [B, S+2])."""
    B = image_features.shape[0]
    S = input_ids.shape[1]
    E = params["proj_w"].shape[1]

    # Pack weights for the fused kernel (tiny concats; in production, pre-pack
    # once outside the per-step forward and store the packed parameters).
    w1cat = jnp.concatenate([params["adapter_w1"][i] for i in range(3)], axis=1)   # [V, 3V]
    b1cat = jnp.concatenate([params["adapter_b1"][i] for i in range(3)], axis=1)   # [1, 3V]
    wbig = jnp.concatenate(
        [params["proj_w"], params["adapter_w2"][0],
         params["adapter_w2"][1], params["adapter_w2"][2]], axis=0)                # [4V, E]
    btot = params["proj_b"] + params["adapter_b2"].sum(axis=0)                     # [1, E]

    img = encode_image_block(
        image_features, w1cat, b1cat, wbig, btot,
        params["image_prefix"][0], params["prefix_proj_w"], params["prefix_proj_b"],
    )                                                   # [2, B, E]
    img_block = jnp.swapaxes(img, 0, 1)                 # [B, 2, E] (prefix, encoded)

    inputs_embeds = jnp.take(params["embedding_table"], input_ids, axis=0)         # [B, S, E]

    # Assemble combined_embeds with in-place style dynamic updates instead of a
    # 3-operand concatenate.
    combined = jnp.zeros((B, S + 2, E), dtype=inputs_embeds.dtype)
    combined = lax.dynamic_update_slice(
        combined, img_block.astype(combined.dtype), (0, 0, 0))
    combined = lax.dynamic_update_slice(combined, inputs_embeds, (0, 2, 0))

    image_attn_mask = jnp.ones((attention_mask.shape[0], 2),
                               dtype=attention_mask.dtype)
    extended_attention_mask = jnp.concatenate(
        [image_attn_mask, attention_mask], axis=1)      # [B, S+2]

    # TODO(synk): LoRA/PEFT-wrapped language-model forward (self.model(...)) is a
    # full transformer and is not translated; we return exactly its inputs.
    return combined, extended_attention_mask


# ----------------------------------------------------------------------------
# Pure-JAX reference for correctness check
# ----------------------------------------------------------------------------
def _reference(params, input_ids, attention_mask, image_features):
    x = image_features
    acc = x @ params["proj_w"] + params["proj_b"][0]
    for i in range(3):
        h = jnp.maximum(x @ params["adapter_w1"][i] + params["adapter_b1"][i, 0], 0.0)
        acc = acc + h @ params["adapter_w2"][i] + params["adapter_b2"][i, 0]
    encoded = acc / 4.0
    prefix = params["image_prefix"][0] @ params["prefix_proj_w"] + params["prefix_proj_b"][0]
    B = x.shape[0]
    image_prefix = jnp.broadcast_to(prefix[None, :, :], (B, 1, prefix.shape[1]))
    inputs_embeds = jnp.take(params["embedding_table"], input_ids, axis=0)
    combined = jnp.concatenate([image_prefix, encoded[:, None, :], inputs_embeds], axis=1)
    mask = jnp.concatenate(
        [jnp.ones((attention_mask.shape[0], 2), attention_mask.dtype), attention_mask],
        axis=1)
    return combined, mask


# ----------------------------------------------------------------------------
if __name__ == "__main__":
    key = jax.random.PRNGKey(0)

    # Small shapes consistent with the module's forward.  E chosen lane-dense
    # (128) and B a multiple of 8 sublanes, per the perf review.
    B = 8        # batch
    V = 32       # vision_model.config.projection_dim (vision_dim)
    E = 128      # language_model hidden_size (projection_dim == embed_dim)
    S = 8        # text sequence length
    VOCAB = 256  # toy vocab for the embedding table

    keys = jax.random.split(key, 12)
    scale = 0.05
    params = {
        # base projection: Linear(V -> E)  (stored as [in, out])
        "proj_w": scale * jax.random.normal(keys[0], (V, E), jnp.float32),
        "proj_b": scale * jax.random.normal(keys[1], (1, E), jnp.float32),
        # 3 adapters stacked: Linear(V->V), ReLU, (Dropout), Linear(V->E)
        "adapter_w1": scale * jax.random.normal(keys[2], (3, V, V), jnp.float32),
        "adapter_b1": scale * jax.random.normal(keys[3], (3, 1, V), jnp.float32),
        "adapter_w2": scale * jax.random.normal(keys[4], (3, V, E), jnp.float32),
        "adapter_b2": scale * jax.random.normal(keys[5], (3, 1, E), jnp.float32),
        # image_prefix parameter [1, 1, E] and its projection Linear(E -> E)
        "image_prefix": jax.random.normal(keys[6], (1, 1, E), jnp.float32),
        "prefix_proj_w": scale * jax.random.normal(keys[7], (E, E), jnp.float32),
        "prefix_proj_b": scale * jax.random.normal(keys[8], (1, E), jnp.float32),
        # language-model input embedding table (get_input_embeddings())
        "embedding_table": scale * jax.random.normal(keys[9], (VOCAB, E), jnp.float32),
    }

    image_features = jax.random.normal(keys[10], (B, V), jnp.float32)
    input_ids = jax.random.randint(keys[11], (B, S), 0, VOCAB, dtype=jnp.int32)
    attention_mask = jnp.ones((B, S), jnp.int32)

    combined, ext_mask = engineering_vl_adapter_forward(
        params, input_ids, attention_mask, image_features)
    jax.block_until_ready(combined)
    jax.block_until_ready(ext_mask)

    ref_combined, ref_mask = _reference(params, input_ids, attention_mask,
                                        image_features)
    assert combined.shape == (B, S + 2, E)
    assert ext_mask.shape == (B, S + 2)
    assert jnp.allclose(combined, ref_combined, atol=1e-5, rtol=1e-5)
    assert jnp.array_equal(ext_mask, ref_mask)

    print("KERNEL_OK")
</pallas_src>

<mosaic_0001>
module attributes {stable_mosaic.version = 11 : i64} {
  func.func @_image_block_kernel(%arg0: i32, %arg1: i32, %arg2: memref<8x32xf32, #tpu.memory_space<vmem>>, %arg3: memref<32x96xf32, #tpu.memory_space<vmem>>, %arg4: memref<1x96xf32, #tpu.memory_space<vmem>>, %arg5: memref<128x128xf32, #tpu.memory_space<vmem>>, %arg6: memref<1x128xf32, #tpu.memory_space<vmem>>, %arg7: memref<1x128xf32, #tpu.memory_space<vmem>>, %arg8: memref<128x128xf32, #tpu.memory_space<vmem>>, %arg9: memref<1x128xf32, #tpu.memory_space<vmem>>, %arg10: memref<2x8x128xf32, #tpu.memory_space<vmem>>, %arg11: memref<8x128xf32, #tpu.memory_space<vmem>>) attributes {dimension_semantics = [#tpu.dimension_semantics<parallel>, #tpu.dimension_semantics<arbitrary>], iteration_bounds = array<i64: 1, 1>, scalar_prefetch = 0 : i64, scratch_operands = 1 : i64, tpu.core_type = #tpu.core_type<tc>, window_params = [{transform_indices = @transform_0, window_bounds = array<i64: 8, 32>}, {pipeline_mode = #tpu.pipeline_mode<synchronous>, transform_indices = @transform_1, window_bounds = array<i64: 32, 96>}, {pipeline_mode = #tpu.pipeline_mode<synchronous>, transform_indices = @transform_2, window_bounds = array<i64: 1, 96>}, {transform_indices = @transform_3, window_bounds = array<i64: 128, 128>}, {transform_indices = @transform_4, window_bounds = array<i64: 1, 128>}, {pipeline_mode = #tpu.pipeline_mode<synchronous>, transform_indices = @transform_5, window_bounds = array<i64: 1, 128>}, {transform_indices = @transform_6, window_bounds = array<i64: 128, 128>}, {transform_indices = @transform_7, window_bounds = array<i64: 1, 128>}, {transform_indices = @transform_8, window_bounds = array<i64: 2, 8, 128>}]} {
    %c0_i32 = arith.constant 0 : i32
    %0 = arith.cmpi eq, %arg1, %c0_i32 : i32
    %1 = arith.extui %0 : i1 to i32
    %c0_i32_0 = arith.constant 0 : i32
    %2 = arith.cmpi ne, %1, %c0_i32_0 : i32
    scf.if %2 {
      %c0_19 = arith.constant 0 : index
      %c0_20 = arith.constant 0 : index
      %24 = vector.load %arg2[%c0_19, %c0_20] : memref<8x32xf32, #tpu.memory_space<vmem>>, vector<8x32xf32>
      %c0_21 = arith.constant 0 : index
      %c0_22 = arith.constant 0 : index
      %25 = vector.load %arg3[%c0_21, %c0_22] : memref<32x96xf32, #tpu.memory_space<vmem>>, vector<32x96xf32>
      %cst_23 = arith.constant dense<0.000000e+00> : vector<8x96xf32>
      %26 = tpu.matmul %24, %25, %cst_23 {dimension_numbers = #tpu.dot_dimension_numbers<[1], [0], [0], [1], [0, 0, 1, 1], [], []>} : vector<8x32xf32>, vector<32x96xf32>, vector<8x96xf32> -> vector<8x96xf32>
      %c0_24 = arith.constant 0 : index
      %c0_25 = arith.constant 0 : index
      %27 = vector.load %arg4[%c0_24, %c0_25] : memref<1x96xf32, #tpu.memory_space<vmem>>, vector<1x96xf32>
      %28 = vector.broadcast %27 : vector<1x96xf32> to vector<8x96xf32>
      %29 = arith.addf %26, %28 : vector<8x96xf32>
      %cst_26 = arith.constant 0.000000e+00 : f32
      %30 = vector.broadcast %cst_26 : f32 to vector<8x96xf32>
      %31 = arith.maximumf %29, %30 : vector<8x96xf32>
      %c0_27 = arith.constant 0 : index
      %c0_28 = arith.constant 0 : index
      %32 = vector.load %arg11[%c0_27, %c0_28] : memref<8x128xf32, #tpu.memory_space<vmem>>, vector<8x32xf32>
      tpu.vector_store %arg11[%c0_27, %c0_28], %24 {strides = array<i32>} : memref<8x128xf32, #tpu.memory_space<vmem>>, vector<8x32xf32>,
      %c0_29 = arith.constant 0 : index
      %c32 = arith.constant 32 : index
      %33 = vector.load %arg11[%c0_29, %c32] : memref<8x128xf32, #tpu.memory_space<vmem>>, vector<8x96xf32>
      tpu.vector_store %arg11[%c0_29, %c32], %31 {strides = array<i32>} : memref<8x128xf32, #tpu.memory_space<vmem>>, vector<8x96xf32>,
    } else {
    }
    %c0 = arith.constant 0 : index
    %c0_1 = arith.constant 0 : index
    %3 = vector.load %arg11[%c0, %c0_1] : memref<8x128xf32, #tpu.memory_space<vmem>>, vector<8x128xf32>
    %c0_2 = arith.constant 0 : index
    %c0_3 = arith.constant 0 : index
    %4 = vector.load %arg5[%c0_2, %c0_3] : memref<128x128xf32, #tpu.memory_space<vmem>>, vector<128x128xf32>
    %cst = arith.constant dense<0.000000e+00> : vector<8x128xf32>
    %5 = tpu.matmul %3, %4, %cst {dimension_numbers = #tpu.dot_dimension_numbers<[1], [0], [0], [1], [0, 0, 1, 1], [], []>} : vector<8x128xf32>, vector<128x128xf32>, vector<8x128xf32> -> vector<8x128xf32>
    %c0_4 = arith.constant 0 : index
    %c0_5 = arith.constant 0 : index
    %6 = vector.load %arg6[%c0_4, %c0_5] : memref<1x128xf32, #tpu.memory_space<vmem>>, vector<1x128xf32>
    %7 = vector.broadcast %6 : vector<1x128xf32> to vector<8x128xf32>
    %8 = arith.addf %5, %7 : vector<8x128xf32>
    %cst_6 = arith.constant 2.500000e-01 : f32
    %9 = vector.broadcast %cst_6 : f32 to vector<8x128xf32>
    %10 = arith.mulf %8, %9 : vector<8x128xf32>
    %c0_7 = arith.constant 0 : index
    %c0_8 = arith.constant 0 : index
    %11 = vector.load %arg7[%c0_7, %c0_8] : memref<1x128xf32, #tpu.memory_space<vmem>>, vector<1x128xf32>
    %c0_9 = arith.constant 0 : index
    %c0_10 = arith.constant 0 : index
    %12 = vector.load %arg8[%c0_9, %c0_10] : memref<128x128xf32, #tpu.memory_space<vmem>>, vector<128x128xf32>
    %cst_11 = arith.constant dense<0.000000e+00> : vector<1x128xf32>
    %13 = tpu.matmul %11, %12, %cst_11 {dimension_numbers = #tpu.dot_dimension_numbers<[1], [0], [0], [1], [0, 0, 1, 1], [], []>} : vector<1x128xf32>, vector<128x128xf32>, vector<1x128xf32> -> vector<1x128xf32>
    %c0_12 = arith.constant 0 : index
    %c0_13 = arith.constant 0 : index
    %14 = vector.load %arg9[%c0_12, %c0_13] : memref<1x128xf32, #tpu.memory_space<vmem>>, vector<1x128xf32>
    %15 = arith.addf %13, %14 : vector<1x128xf32>
    %16 = vector.shape_cast %15 : vector<1x128xf32> to vector<1x128xf32>
    %17 = vector.broadcast %16 : vector<1x128xf32> to vector<8x128xf32>
    %c0_14 = arith.constant 0 : index
    %c0_15 = arith.constant 0 : index
    %c0_16 = arith.constant 0 : index
    %18 = vector.load %arg10[%c0_14, %c0_15, %c0_16] : memref<2x8x128xf32, #tpu.memory_space<vmem>>, vector<1x8x128xf32>
    %19 = vector.shape_cast %18 : vector<1x8x128xf32> to vector<8x128xf32>
    %20 = vector.shape_cast %17 : vector<8x128xf32> to vector<1x8x128xf32>
    tpu.vector_store %arg10[%c0_14, %c0_15, %c0_16], %20 {strides = array<i32>} : memref<2x8x128xf32, #tpu.memory_space<vmem>>, vector<1x8x128xf32>,
    %c1 = arith.constant 1 : index
    %c0_17 = arith.constant 0 : index
    %c0_18 = arith.constant 0 : index
    %21 = vector.load %arg10[%c1, %c0_17, %c0_18] : memref<2x8x128xf32, #tpu.memory_space<vmem>>, vector<1x8x128xf32>
    %22 = vector.shape_cast %21 : vector<1x8x128xf32> to vector<8x128xf32>
    %23 = vector.shape_cast %10 : vector<8x128xf32> to vector<1x8x128xf32>
    tpu.vector_store %arg10[%c1, %c0_17, %c0_18], %23 {strides = array<i32>} : memref<2x8x128xf32, #tpu.memory_space<vmem>>, vector<1x8x128xf32>,
    return
  }
  func.func @transform_0(%arg0: i32, %arg1: i32) -> (i32, i32) {
    %c0_i32 = arith.constant 0 : i32
    %c0_i32_0 = arith.constant 0 : i32
    return %arg0, %c0_i32 : i32, i32
  }
  func.func @transform_1(%arg0: i32, %arg1: i32) -> (i32, i32) {
    %c0_i32 = arith.constant 0 : i32
    %c0_i32_0 = arith.constant 0 : i32
    %c0_i32_1 = arith.constant 0 : i32
    return %c0_i32, %c0_i32_0 : i32, i32
  }
  func.func @transform_2(%arg0: i32, %arg1: i32) -> (i32, i32) {
    %c0_i32 = arith.constant 0 : i32
    %c0_i32_0 = arith.constant 0 : i32
    %c0_i32_1 = arith.constant 0 : i32
    return %c0_i32, %c0_i32_0 : i32, i32
  }
  func.func @transform_3(%arg0: i32, %arg1: i32) -> (i32, i32) {
    %c0_i32 = arith.constant 0 : i32
    %c0_i32_0 = arith.constant 0 : i32
    return %c0_i32, %arg1 : i32, i32
  }
  func.func @transform_4(%arg0: i32, %arg1: i32) -> (i32, i32) {
    %c0_i32 = arith.constant 0 : i32
    %c0_i32_0 = arith.constant 0 : i32
    return %c0_i32, %arg1 : i32, i32
  }
  func.func @transform_5(%arg0: i32, %arg1: i32) -> (i32, i32) {
    %c0_i32 = arith.constant 0 : i32
    %c0_i32_0 = arith.constant 0 : i32
    %c0_i32_1 = arith.constant 0 : i32
    return %c0_i32, %c0_i32_0 : i32, i32
  }
  func.func @transform_6(%arg0: i32, %arg1: i32) -> (i32, i32) {
    %c0_i32 = arith.constant 0 : i32
    %c0_i32_0 = arith.constant 0 : i32
    return %c0_i32, %arg1 : i32, i32
  }
  func.func @transform_7(%arg0: i32, %arg1: i32) -> (i32, i32) {
    %c0_i32 = arith.constant 0 : i32
    %c0_i32_0 = arith.constant 0 : i32
    return %c0_i32, %arg1 : i32, i32
  }
  func.func @transform_8(%arg0: i32, %arg1: i32) -> (i32, i32, i32) {
    %c0_i32 = arith.constant 0 : i32
    %c0_i32_0 = arith.constant 0 : i32
    return %c0_i32, %arg0, %arg1 : i32, i32, i32
  }
}

</mosaic_0001>

<llo_original>
// kernel: engineering_vl_adapter_forward.1
$region0: #{engineering_vl_adapter_forward.1}
  #allocation0 [shape = 'u32[]', space=smem, size = 0x4, offset = 0x4, fixed_abs, tag = 'smem constant byte address 0x4 - core index']
  #allocation1 [shape = 'u32[144,128]{1,0:T(1,128)}', space=vmem, size = 0x12000, scoped, tag = 'internal scratch']
  #allocation2 [shape = 'f32[8,128]{1,0:T(8,128)}', space=vmem, size = 0x1000, scoped, tag = 'scratch operand']
  %s0 = inlined_call_operand.vmem [shape: f32[8,32], index: 0, kind: input, shape index: {}]
  %s1 = inlined_call_operand.vmem [shape: f32[32,96], index: 1, kind: input, shape index: {}]
  %s2 = inlined_call_operand.vmem [shape: f32[1,96], index: 2, kind: input, shape index: {}]
  %s3 = inlined_call_operand.vmem [shape: f32[128,128], index: 3, kind: input, shape index: {}]
  %s4 = inlined_call_operand.vmem [shape: f32[1,128], index: 4, kind: input, shape index: {}]
  %s5 = inlined_call_operand.vmem [shape: f32[1,128], index: 5, kind: input, shape index: {}]
  %s6 = inlined_call_operand.vmem [shape: f32[128,128], index: 6, kind: input, shape index: {}]
  %s7 = inlined_call_operand.vmem [shape: f32[1,128], index: 7, kind: input, shape index: {}]
  %s8 = inlined_call_operand.vmem [shape: f32[2,8,128], index: 8, kind: output, shape index: {}]
  %s9 = sld [smem:[#allocation0]]
  $region46: #{engineering_vl_adapter_forward.1} parent=0
    _
  %s11 = ssub.s32 1, %s9
  %s12 = scalar_select 0, %s11, %s9
  // Predicated region
  $region2: #{engineering_vl_adapter_forward.1} parent=0 // pred_check
    _
  $region3: #{engineering_vl_adapter_forward.1} parent=0 // pred_check_branch
    %14 = sbr.rel (0) target = $region5
  $region4: #{engineering_vl_adapter_forward.1} parent=0 // pred_region
    _
  $region5: #{engineering_vl_adapter_forward.1} parent=0 // pred_fallthru
    _
  // Predicated region
  $region6: #{engineering_vl_adapter_forward.1} parent=0 // pred_check
    _
  $region7: #{engineering_vl_adapter_forward.1} parent=0 // pred_check_branch
    %16 = sbr.rel (0) target = $region9
  $region8: #{engineering_vl_adapter_forward.1} parent=0 // pred_region
    _
  $region9: #{engineering_vl_adapter_forward.1} parent=0 // pred_fallthru
    _
  // Predicated region
  $region10: #{engineering_vl_adapter_forward.1} parent=0 // pred_check
    _
  $region11: #{engineering_vl_adapter_forward.1} parent=0 // pred_check_branch
    %18 = sbr.rel (0) target = $region13
  $region12: #{engineering_vl_adapter_forward.1} parent=0 // pred_region
    _
  $region13: #{engineering_vl_adapter_forward.1} parent=0 // pred_fallthru
    _
  // Predicated region
  $region14: #{engineering_vl_adapter_forward.1} parent=0 // pred_check
    _
  $region15: #{engineering_vl_adapter_forward.1} parent=0 // pred_check_branch
    %20 = sbr.rel (0) target = $region17
  $region16: #{engineering_vl_adapter_forward.1} parent=0 // pred_region
    _
  $region17: #{engineering_vl_adapter_forward.1} parent=0 // pred_fallthru
    _
  // Predicated region
  $region18: #{engineering_vl_adapter_forward.1} parent=0 // pred_check
    _
  $region19: #{engineering_vl_adapter_forward.1} parent=0 // pred_check_branch
    %22 = sbr.rel (0) target = $region21
  $region20: #{engineering_vl_adapter_forward.1} parent=0 // pred_region
    _
  $region21: #{engineering_vl_adapter_forward.1} parent=0 // pred_fallthru
    _
  // Predicated region
  $region22: #{engineering_vl_adapter_forward.1} parent=0 // pred_check
    _
  $region23: #{engineering_vl_adapter_forward.1} parent=0 // pred_check_branch
    %24 = sbr.rel (0) target = $region25
  $region24: #{engineering_vl_adapter_forward.1} parent=0 // pred_region
    _
  $region25: #{engineering_vl_adapter_forward.1} parent=0 // pred_fallthru
    _
  // Predicated region
  $region26: #{engineering_vl_adapter_forward.1} parent=0 // pred_check
    _
  $region27: #{engineering_vl_adapter_forward.1} parent=0 // pred_check_branch
    %26 = sbr.rel (0) target = $region29
  $region28: #{engineering_vl_adapter_forward.1} parent=0 // pred_region
    _
  $region29: #{engineering_vl_adapter_forward.1} parent=0 // pred_fallthru
    _
  // Predicated region
  $region30: #{engineering_vl_adapter_forward.1} parent=0 // pred_check
    _
  $region31: #{engineering_vl_adapter_forward.1} parent=0 // pred_check_branch
    %28 = sbr.rel (0) target = $region33
  $region32: #{engineering_vl_adapter_forward.1} parent=0 // pred_region
    _
  $region33: #{engineering_vl_adapter_forward.1} parent=0 // pred_fallthru
    _
  %p29 = scmp.eq.s32.totalorder 0, 0
  // Predicated region
  $region34: #{engineering_vl_adapter_forward.1} parent=0 // pred_check
    %p30 = pneg %p29
  $region35: #{engineering_vl_adapter_forward.1} parent=0 // pred_check_branch
    %32 = sbr.rel (%p30) target = $region37
  $region36: #{engineering_vl_adapter_forward.1} parent=0 // pred_region
    %v33 = vld [vmem:[%s0] sm:$0xff]
    %v34 = vld [vmem:[%s1] sm:$0xff]
    %v35 = vld [vmem:[%s1 + $0x8] sm:$0xff]
    %v36 = vld [vmem:[%s1 + $0x10] sm:$0xff]
    %v37 = vld [vmem:[%s1 + $0x18] sm:$0xff]
    %v38 = vld [vmem:[%s2] sm:$0x1]
    %v40 = vlaneseq
    %v41 = vshrl.u32 %v40, 7
    %v42 = vsub.s32 0, %v41
    %v43 = vrot.slane %v38, %v42
    %vm45 = vcmask 261120
    %v47 = vsel %vm45, %v33, 0
    %49 = vmatprep.subr.mxu0 0.0
    %50 = vmatpush1.msra.mxu0 %v34
    %51 = vmatprep.subr.mxu0 0.0
    %52 = vmatpush1.msra.mxu0 %v35
    %53 = vmatprep.subr.mxu0 0.0
    %54 = vmatpush1.msra.mxu0 %v36
    %55 = vmatprep.subr.mxu0 0.0
    %56 = vmatpush1.msra.mxu0 %v37
    %57 = vmatprep.subr.mxu0 0.0
    %58 = vmatpush1.msra.mxu0 0.0
    %59 = vmatprep.subr.mxu0 0.0
    %60 = vmatpush1.msra.mxu0 0.0
    %61 = vmatprep.subr.mxu0 0.0
    %62 = vmatpush1.msra.mxu0 0.0
    %63 = vmatprep.subr.mxu0 0.0
    %64 = vmatpush1.msra.mxu0 0.0
    %65 = vmatprep.subr.mxu0 0.0
    %66 = vmatpush1.msra.mxu0 0.0
    %67 = vmatprep.subr.mxu0 0.0
    %68 = vmatpush1.msra.mxu0 0.0
    %69 = vmatprep.subr.mxu0 0.0
    %70 = vmatpush1.msra.mxu0 0.0
    %71 = vmatprep.subr.mxu0 0.0
    %72 = vmatpush1.msra.mxu0 0.0
    %73 = vmatprep.subr.mxu0 0.0
    %74 = vmatpush1.msra.mxu0 0.0
    %75 = vmatprep.subr.mxu0 0.0
    %76 = vmatpush1.msra.mxu0 0.0
    %77 = vmatprep.subr.mxu0 0.0
    %78 = vmatpush1.msra.mxu0 0.0
    %79 = vmatprep.subr.mxu0 0.0
    %80 = vmatpush1.msra.mxu0 0.0
    %81 = vmatprep.subr.mxu0 0.0
    %82 = vmatpush1.msra.mxu0 0.0
    %83 = vmatprep.subr.mxu0 0.0
    %84 = vmatpush1.msra.mxu0 0.0
    %85 = vmatprep.subr.mxu0 0.0
    %86 = vmatpush1.msra.mxu0 0.0
    %87 = vmatprep.subr.mxu0 0.0
    %88 = vmatpush1.msra.mxu0 0.0
    %89 = vmatprep.subr.mxu0 0.0
    %90 = vmatpush1.msra.mxu0 0.0
    %91 = vmatprep.subr.mxu0 0.0
    %92 = vmatpush1.msra.mxu0 0.0
    %93 = vmatprep.subr.mxu0 0.0
    %94 = vmatpush1.msra.mxu0 0.0
    %95 = vmatprep.subr.mxu0 0.0
    %96 = vmatpush1.msra.mxu0 0.0
    %97 = vmatprep.subr.mxu0 0.0
    %98 = vmatpush1.msra.mxu0 0.0
    %99 = vmatprep.subr.mxu0 0.0
    %100 = vmatpush1.msra.mxu0 0.0
    %101 = vmatprep.subr.mxu0 0.0
    %102 = vmatpush1.msra.mxu0 0.0
    %103 = vmatprep.subr.mxu0 0.0
    %104 = vmatpush1.msra.mxu0 0.0
    %105 = vmatprep.subr.mxu0 0.0
    %106 = vmatpush1.msra.mxu0 0.0
    %107 = vmatprep.subr.mxu0 0.0
    %108 = vmatpush1.msra.mxu0 0.0
    %109 = vmatprep.subr.mxu0 0.0
    %110 = vmatpush1.msra.mxu0 0.0
    %111 = vmatprep.subr.mxu0 0.0
    %112 = vmatpush1.msra.mxu0 0.0
    %113 = vmatprep.mubr.f32.mxu0 0.0
    %114 = vmatmul.mubr.f32.gmra.mrb[0].mxu0 %v47
    %v115 = vpop.f32.mrb[0].mxu0
    %v116 = vadd.f32 %v43, %v115
    %v117 = vpop.f32.mrb[0].mxu0
    %118 = vdwg.mxu0
    %v119 = vmax.f32 %v116, 0.0
    %120 = vst.msk [vmem:[#allocation2] sm:$0xff] %vm45, %v33
    %122 = vrot.lane.b32.xlu0 %v119, 32
    %v123 = vpop.permute.xlu0 %122
    %vm125 = vcmask 1047808
    %126 = vst.msk [vmem:[#allocation2] sm:$0xff] %vm125, %v123
  $region37: #{engineering_vl_adapter_forward.1} parent=0 // pred_fallthru
    _
  %v127 = vld [vmem:[#allocation2] sm:$0xff]
  %v128 = vld [vmem:[%s3] sm:$0xff]
  %v129 = vld [vmem:[%s3 + $0x8] sm:$0xff]
  %v130 = vld [vmem:[%s3 + $0x10] sm:$0xff]
  %v131 = vld [vmem:[%s3 + $0x18] sm:$0xff]
  %v132 = vld [vmem:[%s3 + $0x20] sm:$0xff]
  %v133 = vld [vmem:[%s3 + $0x28] sm:$0xff]
  %v134 = vld [vmem:[%s3 + $0x30] sm:$0xff]
  %v135 = vld [vmem:[%s3 + $0x38] sm:$0xff]
  %v136 = vld [vmem:[%s3 + $0x40] sm:$0xff]
  %v137 = vld [vmem:[%s3 + $0x48] sm:$0xff]
  %v138 = vld [vmem:[%s3 + $0x50] sm:$0xff]
  %v139 = vld [vmem:[%s3 + $0x58] sm:$0xff]
  %v140 = vld [vmem:[%s3 + $0x60] sm:$0xff]
  %v141 = vld [vmem:[%s3 + $0x68] sm:$0xff]
  %v142 = vld [vmem:[%s3 + $0x70] sm:$0xff]
  %v143 = vld [vmem:[%s3 + $0x78] sm:$0xff]
  %v144 = vld [vmem:[%s4] sm:$0x1]
  %v146 = vlaneseq
  %v147 = vshrl.u32 %v146, 7
  %v148 = vsub.s32 0, %v147
  %v149 = vrot.slane %v144, %v148
  %151 = vmatprep.subr.mxu0 0.0
  %152 = vmatpush1.msra.mxu0 %v128
  %153 = vmatprep.subr.mxu0 0.0
  %154 = vmatpush1.msra.mxu0 %v129
  %155 = vmatprep.subr.mxu0 0.0
  %156 = vmatpush1.msra.mxu0 %v130
  %157 = vmatprep.subr.mxu0 0.0
  %158 = vmatpush1.msra.mxu0 %v131
  %159 = vmatprep.subr.mxu0 0.0
  %160 = vmatpush1.msra.mxu0 %v132
  %161 = vmatprep.subr.mxu0 0.0
  %162 = vmatpush1.msra.mxu0 %v133
  %163 = vmatprep.subr.mxu0 0.0
  %164 = vmatpush1.msra.mxu0 %v134
  %165 = vmatprep.subr.mxu0 0.0
  %166 = vmatpush1.msra.mxu0 %v135
  %167 = vmatprep.subr.mxu0 0.0
  %168 = vmatpush1.msra.mxu0 %v136
  %169 = vmatprep.subr.mxu0 0.0
  %170 = vmatpush1.msra.mxu0 %v137
  %171 = vmatprep.subr.mxu0 0.0
  %172 = vmatpush1.msra.mxu0 %v138
  %173 = vmatprep.subr.mxu0 0.0
  %174 = vmatpush1.msra.mxu0 %v139
  %175 = vmatprep.subr.mxu0 0.0
  %176 = vmatpush1.msra.mxu0 %v140
  %177 = vmatprep.subr.mxu0 0.0
  %178 = vmatpush1.msra.mxu0 %v141
  %179 = vmatprep.subr.mxu0 0.0
  %180 = vmatpush1.msra.mxu0 %v142
  %181 = vmatprep.subr.mxu0 0.0
  %182 = vmatpush1.msra.mxu0 %v143
  %183 = vmatprep.subr.mxu0 0.0
  %184 = vmatpush1.msra.mxu0 0.0
  %185 = vmatprep.subr.mxu0 0.0
  %186 = vmatpush1.msra.mxu0 0.0
  %187 = vmatprep.subr.mxu0 0.0
  %188 = vmatpush1.msra.mxu0 0.0
  %189 = vmatprep.subr.mxu0 0.0
  %190 = vmatpush1.msra.mxu0 0.0
  %191 = vmatprep.subr.mxu0 0.0
  %192 = vmatpush1.msra.mxu0 0.0
  %193 = vmatprep.subr.mxu0 0.0
  %194 = vmatpush1.msra.mxu0 0.0
  %195 = vmatprep.subr.mxu0 0.0
  %196 = vmatpush1.msra.mxu0 0.0
  %197 = vmatprep.subr.mxu0 0.0
  %198 = vmatpush1.msra.mxu0 0.0
  %199 = vmatprep.subr.mxu0 0.0
  %200 = vmatpush1.msra.mxu0 0.0
  %201 = vmatprep.subr.mxu0 0.0
  %202 = vmatpush1.msra.mxu0 0.0
  %203 = vmatprep.subr.mxu0 0.0
  %204 = vmatpush1.msra.mxu0 0.0
  %205 = vmatprep.subr.mxu0 0.0
  %206 = vmatpush1.msra.mxu0 0.0
  %207 = vmatprep.subr.mxu0 0.0
  %208 = vmatpush1.msra.mxu0 0.0
  %209 = vmatprep.subr.mxu0 0.0
  %210 = vmatpush1.msra.mxu0 0.0
  %211 = vmatprep.subr.mxu0 0.0
  %212 = vmatpush1.msra.mxu0 0.0
  %213 = vmatprep.subr.mxu0 0.0
  %214 = vmatpush1.msra.mxu0 0.0
  %215 = vmatprep.mubr.f32.mxu0 0.0
  %216 = vmatmul.mubr.f32.gmra.mrb[0].mxu0 %v127
  %v217 = vpop.f32.mrb[0].mxu0
  %v218 = vadd.f32 %v149, %v217
  %v219 = vpop.f32.mrb[0].mxu0
  %220 = vdwg.mxu0
  %v221 = vmul.f32 %v218, 0.25
  %v222 = vld [vmem:[%s5] sm:$0x1]
  %v223 = vld [vmem:[%s6] sm:$0xff]
  %v224 = vld [vmem:[%s6 + $0x8] sm:$0xff]
  %v225 = vld [vmem:[%s6 + $0x10] sm:$0xff]
  %v226 = vld [vmem:[%s6 + $0x18] sm:$0xff]
  %v227 = vld [vmem:[%s6 + $0x20] sm:$0xff]
  %v228 = vld [vmem:[%s6 + $0x28] sm:$0xff]
  %v229 = vld [vmem:[%s6 + $0x30] sm:$0xff]
  %v230 = vld [vmem:[%s6 + $0x38] sm:$0xff]
  %v231 = vld [vmem:[%s6 + $0x40] sm:$0xff]
  %v232 = vld [vmem:[%s6 + $0x48] sm:$0xff]
  %v233 = vld [vmem:[%s6 + $0x50] sm:$0xff]
  %v234 = vld [vmem:[%s6 + $0x58] sm:$0xff]
  %v235 = vld [vmem:[%s6 + $0x60] sm:$0xff]
  %v236 = vld [vmem:[%s6 + $0x68] sm:$0xff]
  %v237 = vld [vmem:[%s6 + $0x70] sm:$0xff]
  %v238 = vld [vmem:[%s6 + $0x78] sm:$0xff]
  %v239 = vld [vmem:[%s7] sm:$0x1]
  %240 = vmatprep.subr.mxu0 0.0
  %241 = vmatpush1.msra.mxu0 %v223
  %242 = vmatprep.subr.mxu0 0.0
  %243 = vmatpush1.msra.mxu0 %v224
  %244 = vmatprep.subr.mxu0 0.0
  %245 = vmatpush1.msra.mxu0 %v225
  %246 = vmatprep.subr.mxu0 0.0
  %247 = vmatpush1.msra.mxu0 %v226
  %248 = vmatprep.subr.mxu0 0.0
  %249 = vmatpush1.msra.mxu0 %v227
  %250 = vmatprep.subr.mxu0 0.0
  %251 = vmatpush1.msra.mxu0 %v228
  %252 = vmatprep.subr.mxu0 0.0
  %253 = vmatpush1.msra.mxu0 %v229
  %254 = vmatprep.subr.mxu0 0.0
  %255 = vmatpush1.msra.mxu0 %v230
  %256 = vmatprep.subr.mxu0 0.0
  %257 = vmatpush1.msra.mxu0 %v231
  %258 = vmatprep.subr.mxu0 0.0
  %259 = vmatpush1.msra.mxu0 %v232
  %260 = vmatprep.subr.mxu0 0.0
  %261 = vmatpush1.msra.mxu0 %v233
  %262 = vmatprep.subr.mxu0 0.0
  %263 = vmatpush1.msra.mxu0 %v234
  %264 = vmatprep.subr.mxu0 0.0
  %265 = vmatpush1.msra.mxu0 %v235
  %266 = vmatprep.subr.mxu0 0.0
  %267 = vmatpush1.msra.mxu0 %v236
  %268 = vmatprep.subr.mxu0 0.0
  %269 = vmatpush1.msra.mxu0 %v237
  %270 = vmatprep.subr.mxu0 0.0
  %271 = vmatpush1.msra.mxu0 %v238
  %272 = vmatprep.subr.mxu0 0.0
  %273 = vmatpush1.msra.mxu0 0.0
  %274 = vmatprep.subr.mxu0 0.0
  %275 = vmatpush1.msra.mxu0 0.0
  %276 = vmatprep.subr.mxu0 0.0
  %277 = vmatpush1.msra.mxu0 0.0
  %278 = vmatprep.subr.mxu0 0.0
  %279 = vmatpush1.msra.mxu0 0.0
  %280 = vmatprep.subr.mxu0 0.0
  %281 = vmatpush1.msra.mxu0 0.0
  %282 = vmatprep.subr.mxu0 0.0
  %283 = vmatpush1.msra.mxu0 0.0
  %284 = vmatprep.subr.mxu0 0.0
  %285 = vmatpush1.msra.mxu0 0.0
  %286 = vmatprep.subr.mxu0 0.0
  %287 = vmatpush1.msra.mxu0 0.0
  %288 = vmatprep.subr.mxu0 0.0
  %289 = vmatpush1.msra.mxu0 0.0
  %290 = vmatprep.subr.mxu0 0.0
  %291 = vmatpush1.msra.mxu0 0.0
  %292 = vmatprep.subr.mxu0 0.0
  %293 = vmatpush1.msra.mxu0 0.0
  %294 = vmatprep.subr.mxu0 0.0
  %295 = vmatpush1.msra.mxu0 0.0
  %296 = vmatprep.subr.mxu0 0.0
  %297 = vmatpush1.msra.mxu0 0.0
  %298 = vmatprep.subr.mxu0 0.0
  %299 = vmatpush1.msra.mxu0 0.0
  %300 = vmatprep.subr.mxu0 0.0
  %301 = vmatpush1.msra.mxu0 0.0
  %302 = vmatprep.subr.mxu0 0.0
  %303 = vmatpush1.msra.mxu0 0.0
  %304 = vmatprep.mubr.f32.mxu0 0.0
  %305 = vmatmul.mubr.f32.gmra.mrb[0].mxu0 %v222
  %v306 = vpop.f32.mrb[0].mxu0
  %v307 = vadd.f32 %v239, %v306
  %v308 = vpop.f32.mrb[0].mxu0
  %309 = vdwg.mxu0
  %v310 = vlaneseq
  %v311 = vshrl.u32 %v310, 7
  %v312 = vsub.s32 0, %v311
  %v313 = vrot.slane %v307, %v312
  %314 = vst [vmem:[%s8] sm:$0xff] %v313
  %s315 = scalar_lea.vmem %s8, 8
  %316 = vst [vmem:[%s315] sm:$0xff] %v221
  // Predicated region
  $region38: #{engineering_vl_adapter_forward.1} parent=0 // pred_check
    _
  $region39: #{engineering_vl_adapter_forward.1} parent=0 // pred_check_branch
    %318 = sbr.rel (0) target = $region41
  $region40: #{engineering_vl_adapter_forward.1} parent=0 // pred_region
    _
  $region41: #{engineering_vl_adapter_forward.1} parent=0 // pred_fallthru
    _
  // Predicated region
  $region42: #{engineering_vl_adapter_forward.1} parent=0 // pred_check
    _
  $region43: #{engineering_vl_adapter_forward.1} parent=0 // pred_check_branch
    %320 = sbr.rel (0) target = $region45
  $region44: #{engineering_vl_adapter_forward.1} parent=0 // pred_region
    _
  $region45: #{engineering_vl_adapter_forward.1} parent=0 // pred_fallthru
    _

</llo_original>
